<compile_context>
chip_gen: v6e
topology: v6e:2x2x1
jax: 0.10.0
libtpu: 0.0.40
codegen_flags: <defaults>
</compile_context>

<pallas_src>
import jax
import jax.numpy as jnp
from jax import lax
from jax.experimental import pallas as pl
from jax.experimental.pallas import tpu as pltpu


def _discriminative_kernel(lens_ref,               # (Bp,) int32, SMEM (scalar prefetch)
                           x_ref,                  # (T, bt, D0) bf16, time-major
                           sel_ref,                # (T, bt, 1) f32 one-hot at t = len-1
                           w1_ref, b1_ref,         # fc1: (D0, D1) bf16, (1, D1) f32
                           wih_f_ref, whh_f_ref, bias_f_ref,   # fwd LSTM
                           wih_b_ref, bias_b_ref,               # rev LSTM (ih only)
                           w2_ref, b2_ref,         # fc2
                           w3_ref, b3_ref,         # fc3
                           out_ref,                # (bt, D4) f32
                           gx_ref):                # scratch (T, bt, 4H) f32
    T, bt, D0 = x_ref.shape
    H = whh_f_ref.shape[0]          # whh_f is (H, 4H)
    D1 = w1_ref.shape[1]

    # ---------- hoisted bulk matmuls (bf16 in, f32 accumulate) ----------
    x2d = x_ref[...].reshape(T * bt, D0)                      # layout-preserving (bt % 16 == 0)
    a1 = jnp.maximum(
        jnp.dot(x2d, w1_ref[...], preferred_element_type=jnp.float32)
        + b1_ref[...], 0.0)                                   # fc1 + ReLU, (T*bt, D1) f32
    gx_ref[...] = (jnp.dot(a1.astype(jnp.bfloat16), wih_f_ref[...],
                           preferred_element_type=jnp.float32)
                   + bias_f_ref[...]).reshape(T, bt, 4 * H)   # forward gates, time-major

    # fc1 activation at t = len-1 for every row: masked reduction over T
    # (no per-step carry / select inside the recurrence).
    sel = sel_ref[...]                                        # (T, bt, 1)
    a1_last = jnp.sum(a1.reshape(T, bt, D1) * sel, axis=0)    # (bt, D1)

    whh_f = whh_f_ref[...]                                    # (H, 4H) f32

    def cell(gates, c_prev):
        # PyTorch LSTM gate ordering: input, forget, cell(g), output
        i = jax.nn.sigmoid(gates[:, 0 * H:1 * H])
        f = jax.nn.sigmoid(gates[:, 1 * H:2 * H])
        g = jnp.tanh(gates[:, 2 * H:3 * H])
        o = jax.nn.sigmoid(gates[:, 3 * H:4 * H])
        c = f * c_prev + i * g
        h = o * jnp.tanh(c)
        return h, c

    def step(t, carry):
        h, c, h_sel = carry
        gates = gx_ref[t] + jnp.dot(h, whh_f, preferred_element_type=jnp.float32)
        h, c = cell(gates, c)
        h_sel = h_sel + sel_ref[t] * h          # capture h at t == len-1 (one-hot FMA)
        return h, c, h_sel

    zeros_h = jnp.zeros((bt, H), jnp.float32)
    # Lengths are sorted descending (pack_padded_sequence contract), so the
    # first length of this batch tile bounds every sequence in the tile; skip
    # the padded tail timesteps.
    n_steps = jnp.minimum(lens_ref[pl.program_id(0) * bt], T)
    _, _, h_fwd = lax.fori_loop(0, n_steps, step, (zeros_h, zeros_h, zeros_h))

    # Reverse direction (packed-sequence semantics): at t = len-1 the reverse
    # LSTM has taken exactly one step from a zero state, so weight_hh_reverse
    # contributes nothing to the gathered output.
    gates_b = (jnp.dot(a1_last.astype(jnp.bfloat16), wih_b_ref[...],
                       preferred_element_type=jnp.float32) + bias_b_ref[...])
    h_bwd, _ = cell(gates_b, jnp.zeros((bt, H), jnp.float32))

    h_cat = jnp.concatenate([h_fwd, h_bwd], axis=-1)          # (bt, 2H)
    a2 = jnp.maximum(
        jnp.dot(h_cat, w2_ref[...], preferred_element_type=jnp.float32)
        + b2_ref[...], 0.0)                                    # fc2 + ReLU
    out_ref[...] = jax.nn.sigmoid(                             # fc3 + Sigmoid -> (bt, D4)
        jnp.dot(a2, w3_ref[...], preferred_element_type=jnp.float32)
        + b3_ref[...])


def _round_up(n, m):
    return ((n + m - 1) // m) * m


def _batch_tile(bp):
    """Batch tile (rows per grid step). bp is a multiple of 16."""
    if bp <= 256:
        return bp
    for bt in (256, 128, 64, 32, 16):
        if bp % bt == 0:
            return bt
    return bp


def discriminative_forward(x, x_length, params):
    """x: (B, T, D0) float32 (batch_first, like PyTorch); x_length: (B,) ints
    sorted in descending order (pack_padded_sequence contract)."""
    B, T, D0 = x.shape
    (w1, b1, wih_f, whh_f, bih_f, bhh_f,
     wih_b, whh_b, bih_b, bhh_b, w2, b2, w3, b3) = params
    del whh_b  # exactly zero contribution to the gathered output (see kernel)

    D1 = w1.shape[0]
    H = whh_f.shape[1]
    D3 = w2.shape[0]
    D4 = w3.shape[0]
    G = 4 * H

    # Pad the batch to a multiple of 16 so every (bt, ...) slab is made of
    # whole (8,128) f32 / (16,128) bf16 tiles: the leading-dim reshapes inside
    # the kernel stay layout-preserving and batch tiles satisfy BlockSpec
    # sublane alignment.
    Bp = _round_up(max(B, 16), 16)
    bt = _batch_tile(Bp)
    nb = Bp // bt

    # bf16 time-major activations feed the hoisted MXU matmuls at full rate.
    # TODO(synk): the (B,T,D0)->(T,B,D0) transpose is still done wrapper-side
    # (one bf16 HBM round trip of x); moving it in-kernel would need strided
    # per-timestep gathers that are not worth the lowering risk at these sizes.
    x_tm = jnp.transpose(x.astype(jnp.bfloat16), (1, 0, 2))          # (T, B, D0)
    x_tm = jnp.pad(x_tm, ((0, 0), (0, Bp - B), (0, 0)))

    lens = jnp.clip(x_length.astype(jnp.int32), 1, T)                # guard 1 <= len <= T
    last_t = lens - 1                                                # (B,)
    sel_tm = (jnp.arange(T, dtype=jnp.int32)[:, None]
              == last_t[None, :]).astype(jnp.float32)[:, :, None]    # (T, B, 1)
    sel_tm = jnp.pad(sel_tm, ((0, 0), (0, Bp - B), (0, 0)))          # padded rows: all-zero
    lens_p = jnp.pad(lens, (0, Bp - B), constant_values=1)           # (Bp,) for SMEM

    args = (
        x_tm, sel_tm,
        w1.T.astype(jnp.bfloat16), b1.reshape(1, D1).astype(jnp.float32),
        wih_f.T.astype(jnp.bfloat16), whh_f.T.astype(jnp.float32),
        (bih_f + bhh_f).reshape(1, G).astype(jnp.float32),
        wih_b.T.astype(jnp.bfloat16),
        (bih_b + bhh_b).reshape(1, G).astype(jnp.float32),
        w2.T.astype(jnp.float32), b2.reshape(1, D3).astype(jnp.float32),
        w3.T.astype(jnp.float32), b3.reshape(1, D4).astype(jnp.float32),
    )

    def _const(shape):
        # Weight / bias blocks: whole array, VMEM-resident across the grid.
        return pl.BlockSpec(shape, lambda i, lens_ref: (0,) * len(shape))

    in_specs = [
        pl.BlockSpec((T, bt, D0), lambda i, lens_ref: (0, i, 0)),    # x (time-major)
        pl.BlockSpec((T, bt, 1), lambda i, lens_ref: (0, i, 0)),     # one-hot time mask
        _const((D0, D1)), _const((1, D1)),                           # fc1
        _const((D1, G)), _const((H, G)), _const((1, G)),             # LSTM forward
        _const((D1, G)), _const((1, G)),                             # LSTM reverse (ih only)
        _const((2 * H, D3)), _const((1, D3)),                        # fc2
        _const((D3, D4)), _const((1, D4)),                           # fc3
    ]

    grid_spec = pltpu.PrefetchScalarGridSpec(
        num_scalar_prefetch=1,                                       # lens_p -> SMEM
        grid=(nb,),
        in_specs=in_specs,
        out_specs=pl.BlockSpec((bt, D4), lambda i, lens_ref: (i, 0)),
        scratch_shapes=[pltpu.VMEM((T, bt, G), jnp.float32)],        # time-major fwd gates
    )

    out = pl.pallas_call(
        _discriminative_kernel,
        out_shape=jax.ShapeDtypeStruct((Bp, D4), jnp.float32),
        grid_spec=grid_spec,
        compiler_params=pltpu.CompilerParams(
            dimension_semantics=("parallel",),        # batch tiles shard across cores
            vmem_limit_bytes=32 * 1024 * 1024),
    )(lens_p, *args)
    return out[:B]


def init_params(key, dims):
    """Deterministic init mirroring the shapes of Discriminative.__init__."""
    D0, D1, H, D3, D4 = dims
    ks = jax.random.split(key, 14)

    def u(k, shape, fan_in):
        bound = 1.0 / float(fan_in) ** 0.5
        return jax.random.uniform(k, shape, jnp.float32, -bound, bound)

    w1 = u(ks[0], (D1, D0), D0)          # fc1: Linear(D0, D1)
    b1 = u(ks[1], (D1,), D0)
    wih_f = u(ks[2], (4 * H, D1), H)     # lstm weight_ih_l0
    whh_f = u(ks[3], (4 * H, H), H)      # lstm weight_hh_l0
    bih_f = u(ks[4], (4 * H,), H)
    bhh_f = u(ks[5], (4 * H,), H)
    wih_b = u(ks[6], (4 * H, D1), H)     # lstm weight_ih_l0_reverse
    whh_b = u(ks[7], (4 * H, H), H)      # lstm weight_hh_l0_reverse
    bih_b = u(ks[8], (4 * H,), H)
    bhh_b = u(ks[9], (4 * H,), H)
    w2 = u(ks[10], (D3, 2 * H), 2 * H)   # fc2: Linear(2H, D3)
    b2 = u(ks[11], (D3,), 2 * H)
    w3 = u(ks[12], (D4, D3), D3)         # fc3: Linear(D3, D4)
    b3 = u(ks[13], (D4,), D3)
    return (w1, b1, wih_f, whh_f, bih_f, bhh_f,
            wih_b, whh_b, bih_b, bhh_b, w2, b2, w3, b3)


if __name__ == "__main__":
    # discriminative_dims = [D0, D1, H, D3, D4]
    dims = (16, 32, 32, 16, 1)
    key = jax.random.PRNGKey(0)
    kx, kp = jax.random.split(key)

    B, T = 2, 8
    x = jax.random.normal(kx, (B, T, dims[0]), jnp.float32)
    # pack_padded_sequence(enforce_sorted=True) expects descending lengths
    x_length = jnp.array([8, 5], jnp.int32)

    params = init_params(kp, dims)
    z = discriminative_forward(x, x_length, params)
    jax.block_until_ready(z)
    assert z.shape == (B, 1) and z.dtype == jnp.float32
    assert bool(jnp.all(jnp.isfinite(z)))
    print("KERNEL_OK")
</pallas_src>

<mosaic_0001>
module attributes {stable_mosaic.version = 11 : i64} {
  func.func @_discriminative_kernel(%arg0: i32, %arg1: memref<16xi32, #tpu.memory_space<smem>>, %arg2: memref<8x16x16xbf16, #tpu.memory_space<vmem>>, %arg3: memref<8x16x1xf32, #tpu.memory_space<vmem>>, %arg4: memref<16x32xbf16, #tpu.memory_space<vmem>>, %arg5: memref<1x32xf32, #tpu.memory_space<vmem>>, %arg6: memref<32x128xbf16, #tpu.memory_space<vmem>>, %arg7: memref<32x128xf32, #tpu.memory_space<vmem>>, %arg8: memref<1x128xf32, #tpu.memory_space<vmem>>, %arg9: memref<32x128xbf16, #tpu.memory_space<vmem>>, %arg10: memref<1x128xf32, #tpu.memory_space<vmem>>, %arg11: memref<64x16xf32, #tpu.memory_space<vmem>>, %arg12: memref<1x16xf32, #tpu.memory_space<vmem>>, %arg13: memref<16x1xf32, #tpu.memory_space<vmem>>, %arg14: memref<1x1xf32, #tpu.memory_space<vmem>>, %arg15: memref<16x1xf32, #tpu.memory_space<vmem>>, %arg16: memref<8x16x128xf32, #tpu.memory_space<vmem>>) attributes {dimension_semantics = [#tpu.dimension_semantics<parallel>], iteration_bounds = array<i64: 1>, scalar_prefetch = 1 : i64, scratch_operands = 1 : i64, tpu.core_type = #tpu.core_type<tc>, window_params = [{transform_indices = @transform_0, window_bounds = array<i64: 8, 16, 16>}, {transform_indices = @transform_1, window_bounds = array<i64: 8, 16, 1>}, {pipeline_mode = #tpu.pipeline_mode<synchronous>, transform_indices = @transform_2, window_bounds = array<i64: 16, 32>}, {pipeline_mode = #tpu.pipeline_mode<synchronous>, transform_indices = @transform_3, window_bounds = array<i64: 1, 32>}, {pipeline_mode = #tpu.pipeline_mode<synchronous>, transform_indices = @transform_4, window_bounds = array<i64: 32, 128>}, {pipeline_mode = #tpu.pipeline_mode<synchronous>, transform_indices = @transform_5, window_bounds = array<i64: 32, 128>}, {pipeline_mode = #tpu.pipeline_mode<synchronous>, transform_indices = @transform_6, window_bounds = array<i64: 1, 128>}, {pipeline_mode = #tpu.pipeline_mode<synchronous>, transform_indices = @transform_7, window_bounds = array<i64: 32, 128>}, {pipeline_mode = #tpu.pipeline_mode<synchronous>, transform_indices = @transform_8, window_bounds = array<i64: 1, 128>}, {pipeline_mode = #tpu.pipeline_mode<synchronous>, transform_indices = @transform_9, window_bounds = array<i64: 64, 16>}, {pipeline_mode = #tpu.pipeline_mode<synchronous>, transform_indices = @transform_10, window_bounds = array<i64: 1, 16>}, {pipeline_mode = #tpu.pipeline_mode<synchronous>, transform_indices = @transform_11, window_bounds = array<i64: 16, 1>}, {pipeline_mode = #tpu.pipeline_mode<synchronous>, transform_indices = @transform_12, window_bounds = array<i64: 1, 1>}, {transform_indices = @transform_13, window_bounds = array<i64: 16, 1>}]} {
    %c0 = arith.constant 0 : index
    %c0_0 = arith.constant 0 : index
    %c0_1 = arith.constant 0 : index
    %0 = vector.load %arg2[%c0, %c0_0, %c0_1] : memref<8x16x16xbf16, #tpu.memory_space<vmem>>, vector<8x16x16xbf16>
    %1 = vector.shape_cast %0 : vector<8x16x16xbf16> to vector<128x16xbf16>
    %c0_2 = arith.constant 0 : index
    %c0_3 = arith.constant 0 : index
    %2 = vector.load %arg4[%c0_2, %c0_3] : memref<16x32xbf16, #tpu.memory_space<vmem>>, vector<16x32xbf16>
    %cst = arith.constant dense<0.000000e+00> : vector<128x32xf32>
    %3 = tpu.matmul %1, %2, %cst {dimension_numbers = #tpu.dot_dimension_numbers<[1], [0], [0], [1], [0, 0, 1, 1], [], []>} : vector<128x16xbf16>, vector<16x32xbf16>, vector<128x32xf32> -> vector<128x32xf32>
    %c0_4 = arith.constant 0 : index
    %c0_5 = arith.constant 0 : index
    %4 = vector.load %arg5[%c0_4, %c0_5] : memref<1x32xf32, #tpu.memory_space<vmem>>, vector<1x32xf32>
    %5 = vector.broadcast %4 : vector<1x32xf32> to vector<128x32xf32>
    %6 = arith.addf %3, %5 : vector<128x32xf32>
    %cst_6 = arith.constant 0.000000e+00 : f32
    %7 = vector.broadcast %cst_6 : f32 to vector<128x32xf32>
    %8 = arith.maximumf %6, %7 : vector<128x32xf32>
    %9 = arith.truncf %8 : vector<128x32xf32> to vector<128x32xbf16>
    %c0_7 = arith.constant 0 : index
    %c0_8 = arith.constant 0 : index
    %10 = vector.load %arg6[%c0_7, %c0_8] : memref<32x128xbf16, #tpu.memory_space<vmem>>, vector<32x128xbf16>
    %cst_9 = arith.constant dense<0.000000e+00> : vector<128x128xf32>
    %11 = tpu.matmul %9, %10, %cst_9 {dimension_numbers = #tpu.dot_dimension_numbers<[1], [0], [0], [1], [0, 0, 1, 1], [], []>} : vector<128x32xbf16>, vector<32x128xbf16>, vector<128x128xf32> -> vector<128x128xf32>
    %c0_10 = arith.constant 0 : index
    %c0_11 = arith.constant 0 : index
    %12 = vector.load %arg8[%c0_10, %c0_11] : memref<1x128xf32, #tpu.memory_space<vmem>>, vector<1x128xf32>
    %13 = vector.broadcast %12 : vector<1x128xf32> to vector<128x128xf32>
    %14 = arith.addf %11, %13 : vector<128x128xf32>
    %15 = vector.shape_cast %14 : vector<128x128xf32> to vector<8x16x128xf32>
    %c0_12 = arith.constant 0 : index
    %c0_13 = arith.constant 0 : index
    %c0_14 = arith.constant 0 : index
    %16 = vector.load %arg16[%c0_12, %c0_13, %c0_14] : memref<8x16x128xf32, #tpu.memory_space<vmem>>, vector<8x16x128xf32>
    tpu.vector_store %arg16[%c0_12, %c0_13, %c0_14], %15 {strides = array<i32>} : memref<8x16x128xf32, #tpu.memory_space<vmem>>, vector<8x16x128xf32>,
    %c0_15 = arith.constant 0 : index
    %c0_16 = arith.constant 0 : index
    %c0_17 = arith.constant 0 : index
    %17 = vector.load %arg3[%c0_15, %c0_16, %c0_17] : memref<8x16x1xf32, #tpu.memory_space<vmem>>, vector<8x16x1xf32>
    %18 = vector.shape_cast %8 : vector<128x32xf32> to vector<8x16x32xf32>
    %19 = vector.broadcast %17 : vector<8x16x1xf32> to vector<8x16x32xf32>
    %20 = arith.mulf %18, %19 : vector<8x16x32xf32>
    %cst_18 = arith.constant dense<0.000000e+00> : vector<16x32xf32>
    %21 = vector.multi_reduction <add>, %20, %cst_18 [0] : vector<8x16x32xf32> to vector<16x32xf32>
    %c0_19 = arith.constant 0 : index
    %c0_20 = arith.constant 0 : index
    %22 = vector.load %arg7[%c0_19, %c0_20] : memref<32x128xf32, #tpu.memory_space<vmem>>, vector<32x128xf32>
    %cst_21 = arith.constant 0.000000e+00 : f32
    %23 = vector.broadcast %cst_21 : f32 to vector<16x32xf32>
    %c16_i32 = arith.constant 16 : i32
    %24 = arith.muli %arg0, %c16_i32 : i32
    %25 = arith.index_cast %24 : i32 to index
    %26 = memref.load %arg1[%25] : memref<16xi32, #tpu.memory_space<smem>>
    %c8_i32 = arith.constant 8 : i32
    %27 = arith.minsi %26, %c8_i32 : i32
    %c0_i32 = arith.constant 0 : i32
    %28 = arith.subi %27, %c0_i32 : i32
    %29 = arith.addi %c0_i32, %28 : i32
    %c1_i32 = arith.constant 1 : i32
    %30:3 = scf.for %arg17 = %c0_i32 to %29 step %c1_i32 iter_args(%arg18 = %23, %arg19 = %23, %arg20 = %23) -> (vector<16x32xf32>, vector<16x32xf32>, vector<16x32xf32>)  : i32 {
      %82 = arith.index_cast %arg17 : i32 to index
      %c0_45 = arith.constant 0 : index
      %c0_46 = arith.constant 0 : index
      %83 = vector.load %arg16[%82, %c0_45, %c0_46] : memref<8x16x128xf32, #tpu.memory_space<vmem>>, vector<1x16x128xf32>
      %84 = vector.shape_cast %83 : vector<1x16x128xf32> to vector<16x128xf32>
      %cst_47 = arith.constant dense<0.000000e+00> : vector<16x128xf32>
      %85 = tpu.matmul %arg18, %22, %cst_47 {dimension_numbers = #tpu.dot_dimension_numbers<[1], [0], [0], [1], [0, 0, 1, 1], [], []>} : vector<16x32xf32>, vector<32x128xf32>, vector<16x128xf32> -> vector<16x128xf32>
      %86 = arith.addf %84, %85 : vector<16x128xf32>
      %87 = vector.extract_strided_slice %86 {offsets = [0, 0], sizes = [16, 32], strides = [1, 1]} : vector<16x128xf32> to vector<16x32xf32>
      %88 = arith.negf %87 : vector<16x32xf32>
      %89 = math.exp %88 : vector<16x32xf32>
      %cst_48 = arith.constant 1.000000e+00 : f32
      %90 = vector.broadcast %cst_48 : f32 to vector<16x32xf32>
      %91 = arith.addf %90, %89 : vector<16x32xf32>
      %92 = arith.divf %90, %91 : vector<16x32xf32>
      %93 = vector.extract_strided_slice %86 {offsets = [0, 32], sizes = [16, 32], strides = [1, 1]} : vector<16x128xf32> to vector<16x32xf32>
      %94 = arith.negf %93 : vector<16x32xf32>
      %95 = math.exp %94 : vector<16x32xf32>
      %cst_49 = arith.constant 1.000000e+00 : f32
      %96 = vector.broadcast %cst_49 : f32 to vector<16x32xf32>
      %97 = arith.addf %96, %95 : vector<16x32xf32>
      %98 = arith.divf %96, %97 : vector<16x32xf32>
      %99 = vector.extract_strided_slice %86 {offsets = [0, 64], sizes = [16, 32], strides = [1, 1]} : vector<16x128xf32> to vector<16x32xf32>
      %100 = math.tanh %99 : vector<16x32xf32>
      %101 = vector.extract_strided_slice %86 {offsets = [0, 96], sizes = [16, 32], strides = [1, 1]} : vector<16x128xf32> to vector<16x32xf32>
      %102 = arith.negf %101 : vector<16x32xf32>
      %103 = math.exp %102 : vector<16x32xf32>
      %cst_50 = arith.constant 1.000000e+00 : f32
      %104 = vector.broadcast %cst_50 : f32 to vector<16x32xf32>
      %105 = arith.addf %104, %103 : vector<16x32xf32>
      %106 = arith.divf %104, %105 : vector<16x32xf32>
      %107 = arith.mulf %98, %arg19 : vector<16x32xf32>
      %108 = arith.mulf %92, %100 : vector<16x32xf32>
      %109 = arith.addf %107, %108 : vector<16x32xf32>
      %110 = math.tanh %109 : vector<16x32xf32>
      %111 = arith.mulf %106, %110 : vector<16x32xf32>
      %112 = arith.index_cast %arg17 : i32 to index
      %c0_51 = arith.constant 0 : index
      %c0_52 = arith.constant 0 : index
      %113 = vector.load %arg3[%112, %c0_51, %c0_52] : memref<8x16x1xf32, #tpu.memory_space<vmem>>, vector<1x16x1xf32>
      %114 = vector.shape_cast %113 : vector<1x16x1xf32> to vector<16x1xf32>
      %115 = vector.broadcast %114 : vector<16x1xf32> to vector<16x32xf32>
      %116 = arith.mulf %115, %111 : vector<16x32xf32>
      %117 = arith.addf %arg20, %116 : vector<16x32xf32>
      scf.yield %111, %109, %117 : vector<16x32xf32>, vector<16x32xf32>, vector<16x32xf32>
    }
    %31 = arith.truncf %21 : vector<16x32xf32> to vector<16x32xbf16>
    %c0_22 = arith.constant 0 : index
    %c0_23 = arith.constant 0 : index
    %32 = vector.load %arg9[%c0_22, %c0_23] : memref<32x128xbf16, #tpu.memory_space<vmem>>, vector<32x128xbf16>
    %cst_24 = arith.constant dense<0.000000e+00> : vector<16x128xf32>
    %33 = tpu.matmul %31, %32, %cst_24 {dimension_numbers = #tpu.dot_dimension_numbers<[1], [0], [0], [1], [0, 0, 1, 1], [], []>} : vector<16x32xbf16>, vector<32x128xbf16>, vector<16x128xf32> -> vector<16x128xf32>
    %c0_25 = arith.constant 0 : index
    %c0_26 = arith.constant 0 : index
    %34 = vector.load %arg10[%c0_25, %c0_26] : memref<1x128xf32, #tpu.memory_space<vmem>>, vector<1x128xf32>
    %35 = vector.broadcast %34 : vector<1x128xf32> to vector<16x128xf32>
    %36 = arith.addf %33, %35 : vector<16x128xf32>
    %cst_27 = arith.constant 0.000000e+00 : f32
    %37 = vector.broadcast %cst_27 : f32 to vector<16x32xf32>
    %38 = vector.extract_strided_slice %36 {offsets = [0, 0], sizes = [16, 32], strides = [1, 1]} : vector<16x128xf32> to vector<16x32xf32>
    %39 = arith.negf %38 : vector<16x32xf32>
    %40 = math.exp %39 : vector<16x32xf32>
    %cst_28 = arith.constant 1.000000e+00 : f32
    %41 = vector.broadcast %cst_28 : f32 to vector<16x32xf32>
    %42 = arith.addf %41, %40 : vector<16x32xf32>
    %43 = arith.divf %41, %42 : vector<16x32xf32>
    %44 = vector.extract_strided_slice %36 {offsets = [0, 32], sizes = [16, 32], strides = [1, 1]} : vector<16x128xf32> to vector<16x32xf32>
    %45 = arith.negf %44 : vector<16x32xf32>
    %46 = math.exp %45 : vector<16x32xf32>
    %cst_29 = arith.constant 1.000000e+00 : f32
    %47 = vector.broadcast %cst_29 : f32 to vector<16x32xf32>
    %48 = arith.addf %47, %46 : vector<16x32xf32>
    %49 = arith.divf %47, %48 : vector<16x32xf32>
    %50 = vector.extract_strided_slice %36 {offsets = [0, 64], sizes = [16, 32], strides = [1, 1]} : vector<16x128xf32> to vector<16x32xf32>
    %51 = math.tanh %50 : vector<16x32xf32>
    %52 = vector.extract_strided_slice %36 {offsets = [0, 96], sizes = [16, 32], strides = [1, 1]} : vector<16x128xf32> to vector<16x32xf32>
    %53 = arith.negf %52 : vector<16x32xf32>
    %54 = math.exp %53 : vector<16x32xf32>
    %cst_30 = arith.constant 1.000000e+00 : f32
    %55 = vector.broadcast %cst_30 : f32 to vector<16x32xf32>
    %56 = arith.addf %55, %54 : vector<16x32xf32>
    %57 = arith.divf %55, %56 : vector<16x32xf32>
    %58 = arith.mulf %49, %37 : vector<16x32xf32>
    %59 = arith.mulf %43, %51 : vector<16x32xf32>
    %60 = arith.addf %58, %59 : vector<16x32xf32>
    %61 = math.tanh %60 : vector<16x32xf32>
    %62 = arith.mulf %57, %61 : vector<16x32xf32>
    %63 = tpu.concatenate %30#2, %62 in 1 : vector<16x32xf32>, vector<16x32xf32> -> vector<16x64xf32>
    %c0_31 = arith.constant 0 : index
    %c0_32 = arith.constant 0 : index
    %64 = vector.load %arg11[%c0_31, %c0_32] : memref<64x16xf32, #tpu.memory_space<vmem>>, vector<64x16xf32>
    %cst_33 = arith.constant dense<0.000000e+00> : vector<16x16xf32>
    %65 = tpu.matmul %63, %64, %cst_33 {dimension_numbers = #tpu.dot_dimension_numbers<[1], [0], [0], [1], [0, 0, 1, 1], [], []>} : vector<16x64xf32>, vector<64x16xf32>, vector<16x16xf32> -> vector<16x16xf32>
    %c0_34 = arith.constant 0 : index
    %c0_35 = arith.constant 0 : index
    %66 = vector.load %arg12[%c0_34, %c0_35] : memref<1x16xf32, #tpu.memory_space<vmem>>, vector<1x16xf32>
    %67 = vector.broadcast %66 : vector<1x16xf32> to vector<16x16xf32>
    %68 = arith.addf %65, %67 : vector<16x16xf32>
    %cst_36 = arith.constant 0.000000e+00 : f32
    %69 = vector.broadcast %cst_36 : f32 to vector<16x16xf32>
    %70 = arith.maximumf %68, %69 : vector<16x16xf32>
    %c0_37 = arith.constant 0 : index
    %c0_38 = arith.constant 0 : index
    %71 = vector.load %arg13[%c0_37, %c0_38] : memref<16x1xf32, #tpu.memory_space<vmem>>, vector<16x1xf32>
    %cst_39 = arith.constant dense<0.000000e+00> : vector<16x1xf32>
    %72 = tpu.matmul %70, %71, %cst_39 {dimension_numbers = #tpu.dot_dimension_numbers<[1], [0], [0], [1], [0, 0, 1, 1], [], []>} : vector<16x16xf32>, vector<16x1xf32>, vector<16x1xf32> -> vector<16x1xf32>
    %c0_40 = arith.constant 0 : index
    %c0_41 = arith.constant 0 : index
    %73 = vector.load %arg14[%c0_40, %c0_41] : memref<1x1xf32, #tpu.memory_space<vmem>>, vector<1x1xf32>
    %74 = vector.broadcast %73 : vector<1x1xf32> to vector<16x1xf32>
    %75 = arith.addf %72, %74 : vector<16x1xf32>
    %76 = arith.negf %75 : vector<16x1xf32>
    %77 = math.exp %76 : vector<16x1xf32>
    %cst_42 = arith.constant 1.000000e+00 : f32
    %78 = vector.broadcast %cst_42 : f32 to vector<16x1xf32>
    %79 = arith.addf %78, %77 : vector<16x1xf32>
    %80 = arith.divf %78, %79 : vector<16x1xf32>
    %c0_43 = arith.constant 0 : index
    %c0_44 = arith.constant 0 : index
    %81 = vector.load %arg15[%c0_43, %c0_44] : memref<16x1xf32, #tpu.memory_space<vmem>>, vector<16x1xf32>
    tpu.vector_store %arg15[%c0_43, %c0_44], %80 {strides = array<i32>} : memref<16x1xf32, #tpu.memory_space<vmem>>, vector<16x1xf32>,
    return
  }
  func.func @transform_0(%arg0: i32, %arg1: memref<16xi32, #tpu.memory_space<smem>>) -> (i32, i32, i32) {
    %c0_i32 = arith.constant 0 : i32
    %c0_i32_0 = arith.constant 0 : i32
    %c0_i32_1 = arith.constant 0 : i32
    return %c0_i32, %arg0, %c0_i32_0 : i32, i32, i32
  }
  func.func @transform_1(%arg0: i32, %arg1: memref<16xi32, #tpu.memory_space<smem>>) -> (i32, i32, i32) {
    %c0_i32 = arith.constant 0 : i32
    %c0_i32_0 = arith.constant 0 : i32
    %c0_i32_1 = arith.constant 0 : i32
    return %c0_i32, %arg0, %c0_i32_0 : i32, i32, i32
  }
  func.func @transform_2(%arg0: i32, %arg1: memref<16xi32, #tpu.memory_space<smem>>) -> (i32, i32) {
    %c0_i32 = arith.constant 0 : i32
    %c0_i32_0 = arith.constant 0 : i32
    %c0_i32_1 = arith.constant 0 : i32
    return %c0_i32, %c0_i32_0 : i32, i32
  }
  func.func @transform_3(%arg0: i32, %arg1: memref<16xi32, #tpu.memory_space<smem>>) -> (i32, i32) {
    %c0_i32 = arith.constant 0 : i32
    %c0_i32_0 = arith.constant 0 : i32
    %c0_i32_1 = arith.constant 0 : i32
    return %c0_i32, %c0_i32_0 : i32, i32
  }
  func.func @transform_4(%arg0: i32, %arg1: memref<16xi32, #tpu.memory_space<smem>>) -> (i32, i32) {
    %c0_i32 = arith.constant 0 : i32
    %c0_i32_0 = arith.constant 0 : i32
    %c0_i32_1 = arith.constant 0 : i32
    return %c0_i32, %c0_i32_0 : i32, i32
  }
  func.func @transform_5(%arg0: i32, %arg1: memref<16xi32, #tpu.memory_space<smem>>) -> (i32, i32) {
    %c0_i32 = arith.constant 0 : i32
    %c0_i32_0 = arith.constant 0 : i32
    %c0_i32_1 = arith.constant 0 : i32
    return %c0_i32, %c0_i32_0 : i32, i32
  }
  func.func @transform_6(%arg0: i32, %arg1: memref<16xi32, #tpu.memory_space<smem>>) -> (i32, i32) {
    %c0_i32 = arith.constant 0 : i32
    %c0_i32_0 = arith.constant 0 : i32
    %c0_i32_1 = arith.constant 0 : i32
    return %c0_i32, %c0_i32_0 : i32, i32
  }
  func.func @transform_7(%arg0: i32, %arg1: memref<16xi32, #tpu.memory_space<smem>>) -> (i32, i32) {
    %c0_i32 = arith.constant 0 : i32
    %c0_i32_0 = arith.constant 0 : i32
    %c0_i32_1 = arith.constant 0 : i32
    return %c0_i32, %c0_i32_0 : i32, i32
  }
  func.func @transform_8(%arg0: i32, %arg1: memref<16xi32, #tpu.memory_space<smem>>) -> (i32, i32) {
    %c0_i32 = arith.constant 0 : i32
    %c0_i32_0 = arith.constant 0 : i32
    %c0_i32_1 = arith.constant 0 : i32
    return %c0_i32, %c0_i32_0 : i32, i32
  }
  func.func @transform_9(%arg0: i32, %arg1: memref<16xi32, #tpu.memory_space<smem>>) -> (i32, i32) {
    %c0_i32 = arith.constant 0 : i32
    %c0_i32_0 = arith.constant 0 : i32
    %c0_i32_1 = arith.constant 0 : i32
    return %c0_i32, %c0_i32_0 : i32, i32
  }
  func.func @transform_10(%arg0: i32, %arg1: memref<16xi32, #tpu.memory_space<smem>>) -> (i32, i32) {
    %c0_i32 = arith.constant 0 : i32
    %c0_i32_0 = arith.constant 0 : i32
    %c0_i32_1 = arith.constant 0 : i32
    return %c0_i32, %c0_i32_0 : i32, i32
  }
  func.func @transform_11(%arg0: i32, %arg1: memref<16xi32, #tpu.memory_space<smem>>) -> (i32, i32) {
    %c0_i32 = arith.constant 0 : i32
    %c0_i32_0 = arith.constant 0 : i32
    %c0_i32_1 = arith.constant 0 : i32
    return %c0_i32, %c0_i32_0 : i32, i32
  }
  func.func @transform_12(%arg0: i32, %arg1: memref<16xi32, #tpu.memory_space<smem>>) -> (i32, i32) {
    %c0_i32 = arith.constant 0 : i32
    %c0_i32_0 = arith.constant 0 : i32
    %c0_i32_1 = arith.constant 0 : i32
    return %c0_i32, %c0_i32_0 : i32, i32
  }
  func.func @transform_13(%arg0: i32, %arg1: memref<16xi32, #tpu.memory_space<smem>>) -> (i32, i32) {
    %c0_i32 = arith.constant 0 : i32
    %c0_i32_0 = arith.constant 0 : i32
    return %arg0, %c0_i32 : i32, i32
  }
}

</mosaic_0001>

<llo_original>
// kernel: tpu_custom_call.1
$region0: #{tpu_custom_call.1}
  #allocation0 [shape = 'u32[]', space=smem, size = 0x4, offset = 0x4, fixed_abs, tag = 'smem constant byte address 0x4 - core index']
  #allocation1 [shape = 'u32[144,128]{1,0:T(1,128)}', space=vmem, size = 0x12000, scoped, tag = 'internal scratch']
  #allocation2 [shape = 'f32[8,16,128]{2,1,0:T(8,128)}', space=vmem, size = 0x10000, scoped, tag = 'scratch operand']
  #allocation3 [shape = 's32[1]{0}', space=sflag, size = 0x4, scoped, tag = 'scoped memory for tpu_custom_call.1']
  #allocation4 [shape = 'u8[512]{0}', space=smem, size = 0x200, scoped, tag = 'prefetched SMEM operand 0']
  #allocation5 [shape = 'f32[1,1]{1,0:T(1,128)S(1)}', space=vmem, size = 0x200, scoped, tag = 'scoped memory for tpu_custom_call.1']
  %s0 = inlined_call_operand.vmem [shape: s32[16], index: 0, kind: input, shape index: {}]
  %s1 = inlined_call_operand.vmem [shape: bf16[8,16,16], index: 1, kind: input, shape index: {}]
  %s2 = inlined_call_operand.vmem [shape: f32[8,16,1], index: 2, kind: input, shape index: {}]
  %s3 = inlined_call_operand.vmem [shape: bf16[16,32], index: 3, kind: input, shape index: {}]
  %s4 = inlined_call_operand.vmem [shape: f32[1,32], index: 4, kind: input, shape index: {}]
  %s5 = inlined_call_operand.vmem [shape: bf16[32,128], index: 5, kind: input, shape index: {}]
  %s6 = inlined_call_operand.vmem [shape: f32[32,128], index: 6, kind: input, shape index: {}]
  %s7 = inlined_call_operand.vmem [shape: f32[1,128], index: 7, kind: input, shape index: {}]
  %s8 = inlined_call_operand.vmem [shape: bf16[32,128], index: 8, kind: input, shape index: {}]
  %s9 = inlined_call_operand.vmem [shape: f32[1,128], index: 9, kind: input, shape index: {}]
  %s10 = inlined_call_operand.vmem [shape: f32[64,16], index: 10, kind: input, shape index: {}]
  %s11 = inlined_call_operand.vmem [shape: f32[1,16], index: 11, kind: input, shape index: {}]
  %s12 = inlined_call_operand.vmem [shape: f32[16,1], index: 12, kind: input, shape index: {}]
  %s13 = inlined_call_operand.<no memory space> [shape: f32[1,1], index: 13, kind: input, shape index: {}]
  %s14 = inlined_call_operand.vmem [shape: f32[16,1], index: 14, kind: output, shape index: {}]
  %s15 = sld [smem:[#allocation0]]
  $region69: #{tpu_custom_call.1} parent=0
    _
  %s17 = ssub.s32 1, %s15
  %s18 = scalar_select 0, %s17, %s15
  %s19 = sshll.u32 %s0, 4
  %s20 = int_to_ptr.vmem [resolvable:$true] %s19
  %22 = dma.vmem_to_smem %s20, 16, [#allocation4], [#allocation3]
  %v23 = vstv %s13
  %24 = vst [vmem:[#allocation5] sm:$0x1] %v23
  %25 = dma.done [#allocation3], 16
  %26 = sfence
  // Predicated region
  $region2: #{tpu_custom_call.1} parent=0 // pred_check
    _
  $region3: #{tpu_custom_call.1} parent=0 // pred_check_branch
    %28 = sbr.rel (0) target = $region5
  $region4: #{tpu_custom_call.1} parent=0 // pred_region
    _
  $region5: #{tpu_custom_call.1} parent=0 // pred_fallthru
    _
  // Predicated region
  $region6: #{tpu_custom_call.1} parent=0 // pred_check
    _
  $region7: #{tpu_custom_call.1} parent=0 // pred_check_branch
    %30 = sbr.rel (0) target = $region9
  $region8: #{tpu_custom_call.1} parent=0 // pred_region
    _
  $region9: #{tpu_custom_call.1} parent=0 // pred_fallthru
    _
  // Predicated region
  $region10: #{tpu_custom_call.1} parent=0 // pred_check
    _
  $region11: #{tpu_custom_call.1} parent=0 // pred_check_branch
    %32 = sbr.rel (0) target = $region13
  $region12: #{tpu_custom_call.1} parent=0 // pred_region
    _
  $region13: #{tpu_custom_call.1} parent=0 // pred_fallthru
    _
  // Predicated region
  $region14: #{tpu_custom_call.1} parent=0 // pred_check
    _
  $region15: #{tpu_custom_call.1} parent=0 // pred_check_branch
    %34 = sbr.rel (0) target = $region17
  $region16: #{tpu_custom_call.1} parent=0 // pred_region
    _
  $region17: #{tpu_custom_call.1} parent=0 // pred_fallthru
    _
  // Predicated region
  $region18: #{tpu_custom_call.1} parent=0 // pred_check
    _
  $region19: #{tpu_custom_call.1} parent=0 // pred_check_branch
    %36 = sbr.rel (0) target = $region21
  $region20: #{tpu_custom_call.1} parent=0 // pred_region
    _
  $region21: #{tpu_custom_call.1} parent=0 // pred_fallthru
    _
  // Predicated region
  $region22: #{tpu_custom_call.1} parent=0 // pred_check
    _
  $region23: #{tpu_custom_call.1} parent=0 // pred_check_branch
    %38 = sbr.rel (0) target = $region25
  $region24: #{tpu_custom_call.1} parent=0 // pred_region
    _
  $region25: #{tpu_custom_call.1} parent=0 // pred_fallthru
    _
  // Predicated region
  $region26: #{tpu_custom_call.1} parent=0 // pred_check
    _
  $region27: #{tpu_custom_call.1} parent=0 // pred_check_branch
    %40 = sbr.rel (0) target = $region29
  $region28: #{tpu_custom_call.1} parent=0 // pred_region
    _
  $region29: #{tpu_custom_call.1} parent=0 // pred_fallthru
    _
  // Predicated region
  $region30: #{tpu_custom_call.1} parent=0 // pred_check
    _
  $region31: #{tpu_custom_call.1} parent=0 // pred_check_branch
    %42 = sbr.rel (0) target = $region33
  $region32: #{tpu_custom_call.1} parent=0 // pred_region
    _
  $region33: #{tpu_custom_call.1} parent=0 // pred_fallthru
    _
  // Predicated region
  $region34: #{tpu_custom_call.1} parent=0 // pred_check
    _
  $region35: #{tpu_custom_call.1} parent=0 // pred_check_branch
    %44 = sbr.rel (0) target = $region37
  $region36: #{tpu_custom_call.1} parent=0 // pred_region
    _
  $region37: #{tpu_custom_call.1} parent=0 // pred_fallthru
    _
  // Predicated region
  $region38: #{tpu_custom_call.1} parent=0 // pred_check
    _
  $region39: #{tpu_custom_call.1} parent=0 // pred_check_branch
    %46 = sbr.rel (0) target = $region41
  $region40: #{tpu_custom_call.1} parent=0 // pred_region
    _
  $region41: #{tpu_custom_call.1} parent=0 // pred_fallthru
    _
  // Predicated region
  $region42: #{tpu_custom_call.1} parent=0 // pred_check
    _
  $region43: #{tpu_custom_call.1} parent=0 // pred_check_branch
    %48 = sbr.rel (0) target = $region45
  $region44: #{tpu_custom_call.1} parent=0 // pred_region
    _
  $region45: #{tpu_custom_call.1} parent=0 // pred_fallthru
    _
  // Predicated region
  $region46: #{tpu_custom_call.1} parent=0 // pred_check
    _
  $region47: #{tpu_custom_call.1} parent=0 // pred_check_branch
    %50 = sbr.rel (0) target = $region49
  $region48: #{tpu_custom_call.1} parent=0 // pred_region
    _
  $region49: #{tpu_custom_call.1} parent=0 // pred_fallthru
    _
  // Predicated region
  $region50: #{tpu_custom_call.1} parent=0 // pred_check
    _
  $region51: #{tpu_custom_call.1} parent=0 // pred_check_branch
    %52 = sbr.rel (0) target = $region53
  $region52: #{tpu_custom_call.1} parent=0 // pred_region
    _
  $region53: #{tpu_custom_call.1} parent=0 // pred_fallthru
    _
  %v54 = vld [vmem:[%s1] sm:$0xf]
  %v55 = vld [vmem:[%s1 + $0x4] sm:$0xf]
  %v56 = vld [vmem:[%s1 + $0x8] sm:$0xf]
  %v57 = vld [vmem:[%s1 + $0xc] sm:$0xf]
  %v58 = vld [vmem:[%s1 + $0x10] sm:$0xf]
  %v59 = vld [vmem:[%s1 + $0x14] sm:$0xf]
  %v60 = vld [vmem:[%s1 + $0x18] sm:$0xf]
  %v61 = vld [vmem:[%s1 + $0x1c] sm:$0xf]
  %v62 = vld [vmem:[%s1 + $0x20] sm:$0xf]
  %v63 = vld [vmem:[%s1 + $0x24] sm:$0xf]
  %v64 = vld [vmem:[%s1 + $0x28] sm:$0xf]
  %v65 = vld [vmem:[%s1 + $0x2c] sm:$0xf]
  %v66 = vld [vmem:[%s1 + $0x30] sm:$0xf]
  %v67 = vld [vmem:[%s1 + $0x34] sm:$0xf]
  %v68 = vld [vmem:[%s1 + $0x38] sm:$0xf]
  %v69 = vld [vmem:[%s1 + $0x3c] sm:$0xf]
  %v70 = vld [vmem:[%s3] sm:$0xf]
  %v71 = vld [vmem:[%s3 + $0x4] sm:$0xf]
  %v72 = vld [vmem:[%s4] sm:$0x1]
  %v74 = vlaneseq
  %v75 = vshrl.u32 %v74, 7
  %v76 = vsub.s32 0, %v75
  %v77 = vrot.slane %v72, %v76
  %v95 = vunpack.c.l.b16 %v54
  %v96 = vunpack.c.l.b16 %v55
  %v97 = vunpack.c.l.b16 %v56
  %v98 = vunpack.c.l.b16 %v57
  %v99 = vunpack.c.l.b16 %v58
  %v100 = vunpack.c.l.b16 %v59
  %v101 = vunpack.c.l.b16 %v60
  %v102 = vunpack.c.l.b16 %v61
  %v103 = vunpack.c.l.b16 %v62
  %v104 = vunpack.c.l.b16 %v63
  %v105 = vunpack.c.l.b16 %v64
  %v106 = vunpack.c.l.b16 %v65
  %v107 = vunpack.c.l.b16 %v66
  %v108 = vunpack.c.l.b16 %v67
  %v109 = vunpack.c.l.b16 %v68
  %v110 = vunpack.c.l.b16 %v69
  %v111 = vpack.c.b16 %v96, %v95
  %v112 = vpack.c.b16 %v98, %v97
  %v113 = vpack.c.b16 %v100, %v99
  %v114 = vpack.c.b16 %v102, %v101
  %v115 = vpack.c.b16 %v104, %v103
  %v116 = vpack.c.b16 %v106, %v105
  %v117 = vpack.c.b16 %v108, %v107
  %v118 = vpack.c.b16 %v110, %v109
  %v121 = vunpack.c.l.b16 %v70
  %v122 = vunpack.c.l.b16 %v71
  %v123 = vpack.c.b16 %v122, %v121
  %vm125 = vcmask 130048
  %v127 = vsel %vm125, %v111, 0
  %v130 = vsel %vm125, %v112, 0
  %v133 = vsel %vm125, %v113, 0
  %v136 = vsel %vm125, %v114, 0
  %v139 = vsel %vm125, %v115, 0
  %v142 = vsel %vm125, %v116, 0
  %v145 = vsel %vm125, %v117, 0
  %v148 = vsel %vm125, %v118, 0
  %150 = vmatprep.subr.bf16.mxu0 0
  %151 = vmatpush1.bf16.msra.mxu0 0
  %152 = vmatprep.subr.bf16.mxu0 0
  %153 = vmatpush1.bf16.msra.mxu0 0
  %154 = vmatprep.subr.bf16.mxu0 0
  %155 = vmatpush1.bf16.msra.mxu0 0
  %156 = vmatprep.subr.bf16.mxu0 0
  %157 = vmatpush1.bf16.msra.mxu0 0
  %158 = vmatprep.subr.bf16.mxu0 0
  %159 = vmatpush1.bf16.msra.mxu0 0
  %160 = vmatprep.subr.bf16.mxu0 0
  %161 = vmatpush1.bf16.msra.mxu0 0
  %162 = vmatprep.subr.bf16.mxu0 0
  %163 = vmatpush1.bf16.msra.mxu0 0
  %164 = vmatprep.subr.bf16.mxu0 0
  %165 = vmatpush1.bf16.msra.mxu0 %v123
  %166 = vmatprep.subr.bf16.mxu0 0
  %167 = vmatpush2.bf16.msra.mxu0 0
  %168 = vmatprep.subr.bf16.mxu0 0
  %169 = vmatpush2.bf16.msra.mxu0 0
  %170 = vmatprep.subr.bf16.mxu0 0
  %171 = vmatpush2.bf16.msra.mxu0 0
  %172 = vmatprep.subr.bf16.mxu0 0
  %173 = vmatpush2.bf16.msra.mxu0 0
  %174 = vmatprep.subr.bf16.mxu0 0
  %175 = vmatpush2.bf16.msra.mxu0 0
  %176 = vmatprep.subr.bf16.mxu0 0
  %177 = vmatpush2.bf16.msra.mxu0 0
  %178 = vmatprep.subr.bf16.mxu0 0
  %179 = vmatpush2.bf16.msra.mxu0 0
  %180 = vmatprep.subr.bf16.mxu0 0
  %181 = vmatpush2.bf16.msra.mxu0 0
  %182 = vmatprep.mubr.bf16.mxu0 0
  %183 = vmatmul.mubr.bf16.gmra.mxu0 %v127
  %v184 = vpop.f32.mrf.mxu0
  %v185 = vadd.f32 %v77, %v184
  %v186 = vpop.f32.mrf.mxu0
  %v187 = vpop.f32.mrf.mxu0
  %v188 = vadd.f32 %v77, %v187
  %v189 = vpop.f32.mrf.mxu0
  %190 = vmatprep.mubr.bf16.mxu0 0
  %191 = vmatmul.mubr.bf16.gmra.mxu0 %v130
  %v192 = vpop.f32.mrf.mxu0
  %v193 = vadd.f32 %v77, %v192
  %v194 = vpop.f32.mrf.mxu0
  %v195 = vpop.f32.mrf.mxu0
  %v196 = vadd.f32 %v77, %v195
  %v197 = vpop.f32.mrf.mxu0
  %198 = vmatprep.mubr.bf16.mxu0 0
  %199 = vmatmul.mubr.bf16.gmra.mxu0 %v133
  %v200 = vpop.f32.mrf.mxu0
  %v201 = vadd.f32 %v77, %v200
  %v202 = vpop.f32.mrf.mxu0
  %v203 = vpop.f32.mrf.mxu0
  %v204 = vadd.f32 %v77, %v203
  %v205 = vpop.f32.mrf.mxu0
  %206 = vmatprep.mubr.bf16.mxu0 0
  %207 = vmatmul.mubr.bf16.gmra.mxu0 %v136
  %v208 = vpop.f32.mrf.mxu0
  %v209 = vadd.f32 %v77, %v208
  %v210 = vpop.f32.mrf.mxu0
  %v211 = vpop.f32.mrf.mxu0
  %v212 = vadd.f32 %v77, %v211
  %v213 = vpop.f32.mrf.mxu0
  %214 = vmatprep.mubr.bf16.mxu0 0
  %215 = vmatmul.mubr.bf16.gmra.mxu0 %v139
  %v216 = vpop.f32.mrf.mxu0
  %v217 = vadd.f32 %v77, %v216
  %v218 = vpop.f32.mrf.mxu0
  %v219 = vpop.f32.mrf.mxu0
  %v220 = vadd.f32 %v77, %v219
  %v221 = vpop.f32.mrf.mxu0
  %222 = vmatprep.mubr.bf16.mxu0 0
  %223 = vmatmul.mubr.bf16.gmra.mxu0 %v142
  %v224 = vpop.f32.mrf.mxu0
  %v225 = vadd.f32 %v77, %v224
  %v226 = vpop.f32.mrf.mxu0
  %v227 = vpop.f32.mrf.mxu0
  %v228 = vadd.f32 %v77, %v227
  %v229 = vpop.f32.mrf.mxu0
  %230 = vmatprep.mubr.bf16.mxu0 0
  %231 = vmatmul.mubr.bf16.gmra.mxu0 %v145
  %v232 = vpop.f32.mrf.mxu0
  %v233 = vadd.f32 %v77, %v232
  %v234 = vpop.f32.mrf.mxu0
  %v235 = vpop.f32.mrf.mxu0
  %v236 = vadd.f32 %v77, %v235
  %v237 = vpop.f32.mrf.mxu0
  %238 = vmatprep.mubr.bf16.mxu0 0
  %239 = vmatmul.mubr.bf16.gmra.mxu0 %v148
  %v240 = vpop.f32.mrf.mxu0
  %v241 = vadd.f32 %v77, %v240
  %v242 = vpop.f32.mrf.mxu0
  %v243 = vpop.f32.mrf.mxu0
  %v244 = vadd.f32 %v77, %v243
  %v245 = vpop.f32.mrf.mxu0
  %246 = vdwg.mxu0
  %v247 = vmax.f32 %v185, 0.0
  %v248 = vmax.f32 %v188, 0.0
  %v249 = vmax.f32 %v193, 0.0
  %v250 = vmax.f32 %v196, 0.0
  %v251 = vmax.f32 %v201, 0.0
  %v252 = vmax.f32 %v204, 0.0
  %v253 = vmax.f32 %v209, 0.0
  %v254 = vmax.f32 %v212, 0.0
  %v255 = vmax.f32 %v217, 0.0
  %v256 = vmax.f32 %v220, 0.0
  %v257 = vmax.f32 %v225, 0.0
  %v258 = vmax.f32 %v228, 0.0
  %v259 = vmax.f32 %v233, 0.0
  %v260 = vmax.f32 %v236, 0.0
  %v261 = vmax.f32 %v241, 0.0
  %v262 = vmax.f32 %v244, 0.0
  %v263 = vpack.c.bf16 %v248, %v247
  %v264 = vpack.c.bf16 %v250, %v249
  %v265 = vpack.c.bf16 %v252, %v251
  %v266 = vpack.c.bf16 %v254, %v253
  %v267 = vpack.c.bf16 %v256, %v255
  %v268 = vpack.c.bf16 %v258, %v257
  %v269 = vpack.c.bf16 %v260, %v259
  %v270 = vpack.c.bf16 %v262, %v261
  %v271 = vld [vmem:[%s5] sm:$0xf]
  %v272 = vld [vmem:[%s5 + $0x4] sm:$0xf]
  %v273 = vld [vmem:[%s5 + $0x8] sm:$0xf]
  %v274 = vld [vmem:[%s5 + $0xc] sm:$0xf]
  %v275 = vld [vmem:[%s7] sm:$0x1]
  %v277 = vlaneseq
  %v278 = vshrl.u32 %v277, 7
  %v279 = vsub.s32 0, %v278
  %v280 = vrot.slane %v275, %v279
  %v286 = vunpack.c.l.b16 %v271
  %v287 = vunpack.c.l.b16 %v272
  %v288 = vunpack.c.l.b16 %v273
  %v289 = vunpack.c.l.b16 %v274
  %v290 = vpack.c.b16 %v287, %v286
  %v291 = vpack.c.b16 %v289, %v288
  %vm294 = vcmask 261120
  %v296 = vsel %vm294, %v263, 0
  %v299 = vsel %vm294, %v264, 0
  %v302 = vsel %vm294, %v265, 0
  %v305 = vsel %vm294, %v266, 0
  %v308 = vsel %vm294, %v267, 0
  %v311 = vsel %vm294, %v268, 0
  %v314 = vsel %vm294, %v269, 0
  %v317 = vsel %vm294, %v270, 0
  %319 = vmatprep.subr.bf16.mxu0 0
  %320 = vmatpush1.bf16.msra.mxu0 0
  %321 = vmatprep.subr.bf16.mxu0 0
  %322 = vmatpush1.bf16.msra.mxu0 0
  %323 = vmatprep.subr.bf16.mxu0 0
  %324 = vmatpush1.bf16.msra.mxu0 0
  %325 = vmatprep.subr.bf16.mxu0 0
  %326 = vmatpush1.bf16.msra.mxu0 0
  %327 = vmatprep.subr.bf16.mxu0 0
  %328 = vmatpush1.bf16.msra.mxu0 0
  %329 = vmatprep.subr.bf16.mxu0 0
  %330 = vmatpush1.bf16.msra.mxu0 0
  %331 = vmatprep.subr.bf16.mxu0 0
  %332 = vmatpush1.bf16.msra.mxu0 %v291
  %333 = vmatprep.subr.bf16.mxu0 0
  %334 = vmatpush1.bf16.msra.mxu0 %v290
  %335 = vmatprep.subr.bf16.mxu0 0
  %336 = vmatpush2.bf16.msra.mxu0 0
  %337 = vmatprep.subr.bf16.mxu0 0
  %338 = vmatpush2.bf16.msra.mxu0 0
  %339 = vmatprep.subr.bf16.mxu0 0
  %340 = vmatpush2.bf16.msra.mxu0 0
  %341 = vmatprep.subr.bf16.mxu0 0
  %342 = vmatpush2.bf16.msra.mxu0 0
  %343 = vmatprep.subr.bf16.mxu0 0
  %344 = vmatpush2.bf16.msra.mxu0 0
  %345 = vmatprep.subr.bf16.mxu0 0
  %346 = vmatpush2.bf16.msra.mxu0 0
  %347 = vmatprep.subr.bf16.mxu0 0
  %348 = vmatpush2.bf16.msra.mxu0 0
  %349 = vmatprep.subr.bf16.mxu0 0
  %350 = vmatpush2.bf16.msra.mxu0 0
  %351 = vmatprep.mubr.bf16.mxu0 0
  %352 = vmatmul.mubr.bf16.gmra.mxu0 %v296
  %v353 = vpop.f32.mrf.mxu0
  %v354 = vadd.f32 %v280, %v353
  %v355 = vpop.f32.mrf.mxu0
  %v356 = vpop.f32.mrf.mxu0
  %v357 = vadd.f32 %v280, %v356
  %v358 = vpop.f32.mrf.mxu0
  %359 = vmatprep.mubr.bf16.mxu0 0
  %360 = vmatmul.mubr.bf16.gmra.mxu0 %v299
  %v361 = vpop.f32.mrf.mxu0
  %v362 = vadd.f32 %v280, %v361
  %v363 = vpop.f32.mrf.mxu0
  %v364 = vpop.f32.mrf.mxu0
  %v365 = vadd.f32 %v280, %v364
  %v366 = vpop.f32.mrf.mxu0
  %367 = vmatprep.mubr.bf16.mxu0 0
  %368 = vmatmul.mubr.bf16.gmra.mxu0 %v302
  %v369 = vpop.f32.mrf.mxu0
  %v370 = vadd.f32 %v280, %v369
  %v371 = vpop.f32.mrf.mxu0
  %v372 = vpop.f32.mrf.mxu0
  %v373 = vadd.f32 %v280, %v372
  %v374 = vpop.f32.mrf.mxu0
  %375 = vmatprep.mubr.bf16.mxu0 0
  %376 = vmatmul.mubr.bf16.gmra.mxu0 %v305
  %v377 = vpop.f32.mrf.mxu0
  %v378 = vadd.f32 %v280, %v377
  %v379 = vpop.f32.mrf.mxu0
  %v380 = vpop.f32.mrf.mxu0
  %v381 = vadd.f32 %v280, %v380
  %v382 = vpop.f32.mrf.mxu0
  %383 = vmatprep.mubr.bf16.mxu0 0
  %384 = vmatmul.mubr.bf16.gmra.mxu0 %v308
  %v385 = vpop.f32.mrf.mxu0
  %v386 = vadd.f32 %v280, %v385
  %v387 = vpop.f32.mrf.mxu0
  %v388 = vpop.f32.mrf.mxu0
  %v389 = vadd.f32 %v280, %v388
  %v390 = vpop.f32.mrf.mxu0
  %391 = vmatprep.mubr.bf16.mxu0 0
  %392 = vmatmul.mubr.bf16.gmra.mxu0 %v311
  %v393 = vpop.f32.mrf.mxu0
  %v394 = vadd.f32 %v280, %v393
  %v395 = vpop.f32.mrf.mxu0
  %v396 = vpop.f32.mrf.mxu0
  %v397 = vadd.f32 %v280, %v396
  %v398 = vpop.f32.mrf.mxu0
  %399 = vmatprep.mubr.bf16.mxu0 0
  %400 = vmatmul.mubr.bf16.gmra.mxu0 %v314
  %v401 = vpop.f32.mrf.mxu0
  %v402 = vadd.f32 %v280, %v401
  %v403 = vpop.f32.mrf.mxu0
  %v404 = vpop.f32.mrf.mxu0
  %v405 = vadd.f32 %v280, %v404
  %v406 = vpop.f32.mrf.mxu0
  %407 = vmatprep.mubr.bf16.mxu0 0
  %408 = vmatmul.mubr.bf16.gmra.mxu0 %v317
  %v409 = vpop.f32.mrf.mxu0
  %v410 = vadd.f32 %v280, %v409
  %v411 = vpop.f32.mrf.mxu0
  %v412 = vpop.f32.mrf.mxu0
  %v413 = vadd.f32 %v280, %v412
  %v414 = vpop.f32.mrf.mxu0
  %415 = vdwg.mxu0
  %416 = vst [vmem:[#allocation2] sm:$0xff] %v354
  %417 = vst [vmem:[#allocation2 + $0x8] sm:$0xff] %v357
  %418 = vst [vmem:[#allocation2 + $0x10] sm:$0xff] %v362
  %419 = vst [vmem:[#allocation2 + $0x18] sm:$0xff] %v365
  %420 = vst [vmem:[#allocation2 + $0x20] sm:$0xff] %v370
  %421 = vst [vmem:[#allocation2 + $0x28] sm:$0xff] %v373
  %422 = vst [vmem:[#allocation2 + $0x30] sm:$0xff] %v378
  %423 = vst [vmem:[#allocation2 + $0x38] sm:$0xff] %v381
  %424 = vst [vmem:[#allocation2 + $0x40] sm:$0xff] %v386
  %425 = vst [vmem:[#allocation2 + $0x48] sm:$0xff] %v389
  %426 = vst [vmem:[#allocation2 + $0x50] sm:$0xff] %v394
  %427 = vst [vmem:[#allocation2 + $0x58] sm:$0xff] %v397
  %428 = vst [vmem:[#allocation2 + $0x60] sm:$0xff] %v402
  %429 = vst [vmem:[#allocation2 + $0x68] sm:$0xff] %v405
  %430 = vst [vmem:[#allocation2 + $0x70] sm:$0xff] %v410
  %431 = vst [vmem:[#allocation2 + $0x78] sm:$0xff] %v413
  %v432 = vld [vmem:[%s2] sm:$0xff]
  %v433 = vld [vmem:[%s2 + $0x8] sm:$0xff]
  %v434 = vld [vmem:[%s2 + $0x10] sm:$0xff]
  %v435 = vld [vmem:[%s2 + $0x18] sm:$0xff]
  %v436 = vld [vmem:[%s2 + $0x20] sm:$0xff]
  %v437 = vld [vmem:[%s2 + $0x28] sm:$0xff]
  %v438 = vld [vmem:[%s2 + $0x30] sm:$0xff]
  %v439 = vld [vmem:[%s2 + $0x38] sm:$0xff]
  %v440 = vld [vmem:[%s2 + $0x40] sm:$0xff]
  %v441 = vld [vmem:[%s2 + $0x48] sm:$0xff]
  %v442 = vld [vmem:[%s2 + $0x50] sm:$0xff]
  %v443 = vld [vmem:[%s2 + $0x58] sm:$0xff]
  %v444 = vld [vmem:[%s2 + $0x60] sm:$0xff]
  %v445 = vld [vmem:[%s2 + $0x68] sm:$0xff]
  %v446 = vld [vmem:[%s2 + $0x70] sm:$0xff]
  %v447 = vld [vmem:[%s2 + $0x78] sm:$0xff]
  %449 = vset.pattern.permute.xlu0 0
  %450 = vperm.xlu0 %449, %v432
  %v451 = vpop.permute.xlu0 %450
  %454 = vset.pattern.permute.xlu0 0
  %455 = vperm.xlu0 %454, %v433
  %v456 = vpop.permute.xlu0 %455
  %459 = vset.pattern.permute.xlu0 0
  %460 = vperm.xlu0 %459, %v434
  %v461 = vpop.permute.xlu0 %460
  %464 = vset.pattern.permute.xlu0 0
  %465 = vperm.xlu0 %464, %v435
  %v466 = vpop.permute.xlu0 %465
  %469 = vset.pattern.permute.xlu0 0
  %470 = vperm.xlu0 %469, %v436
  %v471 = vpop.permute.xlu0 %470
  %474 = vset.pattern.permute.xlu0 0
  %475 = vperm.xlu0 %474, %v437
  %v476 = vpop.permute.xlu0 %475
  %479 = vset.pattern.permute.xlu0 0
  %480 = vperm.xlu0 %479, %v438
  %v481 = vpop.permute.xlu0 %480
  %484 = vset.pattern.permute.xlu0 0
  %485 = vperm.xlu0 %484, %v439
  %v486 = vpop.permute.xlu0 %485
  %489 = vset.pattern.permute.xlu0 0
  %490 = vperm.xlu0 %489, %v440
  %v491 = vpop.permute.xlu0 %490
  %494 = vset.pattern.permute.xlu0 0
  %495 = vperm.xlu0 %494, %v441
  %v496 = vpop.permute.xlu0 %495
  %499 = vset.pattern.permute.xlu0 0
  %500 = vperm.xlu0 %499, %v442
  %v501 = vpop.permute.xlu0 %500
  %504 = vset.pattern.permute.xlu0 0
  %505 = vperm.xlu0 %504, %v443
  %v506 = vpop.permute.xlu0 %505
  %509 = vset.pattern.permute.xlu0 0
  %510 = vperm.xlu0 %509, %v444
  %v511 = vpop.permute.xlu0 %510
  %514 = vset.pattern.permute.xlu0 0
  %515 = vperm.xlu0 %514, %v445
  %v516 = vpop.permute.xlu0 %515
  %519 = vset.pattern.permute.xlu0 0
  %520 = vperm.xlu0 %519, %v446
  %v521 = vpop.permute.xlu0 %520
  %524 = vset.pattern.permute.xlu0 0
  %525 = vperm.xlu0 %524, %v447
  %v526 = vpop.permute.xlu0 %525
  %v528 = vmul.f32 %v247, %v451
  %v529 = vmul.f32 %v248, %v456
  %v530 = vmul.f32 %v249, %v461
  %v531 = vmul.f32 %v250, %v466
  %v532 = vmul.f32 %v251, %v471
  %v533 = vmul.f32 %v252, %v476
  %v534 = vmul.f32 %v253, %v481
  %v535 = vmul.f32 %v254, %v486
  %v536 = vmul.f32 %v255, %v491
  %v537 = vmul.f32 %v256, %v496
  %v538 = vmul.f32 %v257, %v501
  %v539 = vmul.f32 %v258, %v506
  %v540 = vmul.f32 %v259, %v511
  %v541 = vmul.f32 %v260, %v516
  %v542 = vmul.f32 %v261, %v521
  %v543 = vmul.f32 %v262, %v526
  %v544 = vsel %vm294, %v528, 0.0
  %v545 = vsel %vm294, %v530, 0.0
  %v546 = vadd.f32 %v544, %v545
  %v547 = vsel %vm294, %v532, 0.0
  %v548 = vadd.f32 %v546, %v547
  %v549 = vsel %vm294, %v534, 0.0
  %v550 = vadd.f32 %v548, %v549
  %v551 = vsel %vm294, %v536, 0.0
  %v552 = vadd.f32 %v550, %v551
  %v553 = vsel %vm294, %v538, 0.0
  %v554 = vadd.f32 %v552, %v553
  %v555 = vsel %vm294, %v540, 0.0
  %v556 = vadd.f32 %v554, %v555
  %v557 = vsel %vm294, %v542, 0.0
  %v558 = vadd.f32 %v556, %v557
  %v559 = vsel %vm294, %v529, 0.0
  %v560 = vsel %vm294, %v531, 0.0
  %v561 = vadd.f32 %v559, %v560
  %v562 = vsel %vm294, %v533, 0.0
  %v563 = vadd.f32 %v561, %v562
  %v564 = vsel %vm294, %v535, 0.0
  %v565 = vadd.f32 %v563, %v564
  %v566 = vsel %vm294, %v537, 0.0
  %v567 = vadd.f32 %v565, %v566
  %v568 = vsel %vm294, %v539, 0.0
  %v569 = vadd.f32 %v567, %v568
  %v570 = vsel %vm294, %v541, 0.0
  %v571 = vadd.f32 %v569, %v570
  %v572 = vsel %vm294, %v543, 0.0
  %v573 = vadd.f32 %v571, %v572
  %v574 = vld [vmem:[%s6] sm:$0xff]
  %v575 = vld [vmem:[%s6 + $0x8] sm:$0xff]
  %v576 = vld [vmem:[%s6 + $0x10] sm:$0xff]
  %v577 = vld [vmem:[%s6 + $0x18] sm:$0xff]
  %s578 = smul.u32 0, 16
  %s579 = sld [smem:[#allocation4 + %s578]]
  %p580 = scmp.lt.s32.totalorder %s579, 8
  %s581 = scalar_select %p580, %s579, 8
  // While loop
  $region54: #{tpu_custom_call.1} parent=0 // loop_pre_header
    _
  $region55: #{tpu_custom_call.1} parent=0 // loop_header
    %s583 = sphi 0, %s585
    %p584 = scmp.ge.s32.totalorder %s583, %s581
    %v588 = vphi 0.0, %v731
    %v589 = vphi 0.0, %v732
    %v590 = vphi 0.0, %v719
    %v591 = vphi 0.0, %v720
    %v592 = vphi 0.0, %v748
    %v593 = vphi 0.0, %v749
  $region56: #{tpu_custom_call.1} parent=0 // loop_header_branch
    %587 = sbr.rel (%p584) target = $region60
  $region57: #{tpu_custom_call.1} parent=0 // loop_body
    %s594 = smul.u32 %s583, 16
    %s595 = scalar_lea.vmem [#allocation2], %s594
    %v596 = vld [vmem:[%s595] sm:$0xff]
    %v597 = vld [vmem:[%s595 + $0x8] sm:$0xff]
    %600 = vrot.lane.b32.xlu0 %v588, 32
    %v601 = vpop.permute.xlu0 %600
    %602 = vrot.lane.b32.xlu0 %v589, 32
    %v603 = vpop.permute.xlu0 %602
    %v604 = vsel %vm294, %v601, 0
    %v606 = vsel %vm294, %v603, 0
    %608 = vmatprep.subr.mxu0 0.0
    %609 = vmatpush1.msra.mxu0 0.0
    %610 = vmatprep.subr.mxu0 0.0
    %611 = vmatpush1.msra.mxu0 0.0
    %612 = vmatprep.subr.mxu0 0.0
    %613 = vmatpush1.msra.mxu0 0.0
    %614 = vmatprep.subr.mxu0 0.0
    %615 = vmatpush1.msra.mxu0 0.0
    %616 = vmatprep.subr.mxu0 0.0
    %617 = vmatpush1.msra.mxu0 0.0
    %618 = vmatprep.subr.mxu0 0.0
    %619 = vmatpush1.msra.mxu0 0.0
    %620 = vmatprep.subr.mxu0 0.0
    %621 = vmatpush1.msra.mxu0 0.0
    %622 = vmatprep.subr.mxu0 0.0
    %623 = vmatpush1.msra.mxu0 0.0
    %624 = vmatprep.subr.mxu0 0.0
    %625 = vmatpush1.msra.mxu0 0.0
    %626 = vmatprep.subr.mxu0 0.0
    %627 = vmatpush1.msra.mxu0 0.0
    %628 = vmatprep.subr.mxu0 0.0
    %629 = vmatpush1.msra.mxu0 0.0
    %630 = vmatprep.subr.mxu0 0.0
    %631 = vmatpush1.msra.mxu0 0.0
    %632 = vmatprep.subr.mxu0 0.0
    %633 = vmatpush1.msra.mxu0 %v577
    %634 = vmatprep.subr.mxu0 0.0
    %635 = vmatpush1.msra.mxu0 %v576
    %636 = vmatprep.subr.mxu0 0.0
    %637 = vmatpush1.msra.mxu0 %v575
    %638 = vmatprep.subr.mxu0 0.0
    %639 = vmatpush1.msra.mxu0 %v574
    %640 = vmatprep.subr.mxu0 0.0
    %641 = vmatpush2.msra.mxu0 0.0
    %642 = vmatprep.subr.mxu0 0.0
    %643 = vmatpush2.msra.mxu0 0.0
    %644 = vmatprep.subr.mxu0 0.0
    %645 = vmatpush2.msra.mxu0 0.0
    %646 = vmatprep.subr.mxu0 0.0
    %647 = vmatpush2.msra.mxu0 0.0
    %648 = vmatprep.subr.mxu0 0.0
    %649 = vmatpush2.msra.mxu0 0.0
    %650 = vmatprep.subr.mxu0 0.0
    %651 = vmatpush2.msra.mxu0 0.0
    %652 = vmatprep.subr.mxu0 0.0
    %653 = vmatpush2.msra.mxu0 0.0
    %654 = vmatprep.subr.mxu0 0.0
    %655 = vmatpush2.msra.mxu0 0.0
    %656 = vmatprep.subr.mxu0 0.0
    %657 = vmatpush2.msra.mxu0 0.0
    %658 = vmatprep.subr.mxu0 0.0
    %659 = vmatpush2.msra.mxu0 0.0
    %660 = vmatprep.subr.mxu0 0.0
    %661 = vmatpush2.msra.mxu0 0.0
    %662 = vmatprep.subr.mxu0 0.0
    %663 = vmatpush2.msra.mxu0 0.0
    %664 = vmatprep.subr.mxu0 0.0
    %665 = vmatpush2.msra.mxu0 0.0
    %666 = vmatprep.subr.mxu0 0.0
    %667 = vmatpush2.msra.mxu0 0.0
    %668 = vmatprep.subr.mxu0 0.0
    %669 = vmatpush2.msra.mxu0 0.0
    %670 = vmatprep.subr.mxu0 0.0
    %671 = vmatpush2.msra.mxu0 0.0
    %672 = vmatprep.mubr.f32.mxu0 0.0
    %673 = vmatmul.mubr.f32.gmra.mxu0 %v604
    %v674 = vpop.f32.mrf.mxu0
    %v675 = vadd.f32 0.0, %v674
    %v676 = vpop.f32.mrf.mxu0
    %677 = vmatprep.mubr.f32.mxu0 0.0
    %678 = vmatmul.mubr.f32.gmra.mxu0 %v606
    %v679 = vpop.f32.mrf.mxu0
    %v680 = vadd.f32 0.0, %v679
    %v681 = vpop.f32.mrf.mxu0
    %682 = vdwg.mxu0
    %v683 = vadd.f32 %v596, %v675
    %v684 = vadd.f32 %v597, %v680
    %v685 = vxor.u32 %v683, 2147483648
    %v686 = vxor.u32 %v684, 2147483648
    %v687 = vmul.f32 %v685, 1.442695
    %v688 = vpow.pop %v687
    %v689 = vmul.f32 %v686, 1.442695
    %v690 = vpow.pop %v689
    %v691 = vadd.f32 %v688, 1.0
    %v692 = vadd.f32 %v690, 1.0
    %v693 = vrcp.pop %v691
    %v694 = vmul.f32 1.0, %v693
    %v695 = vrcp.pop %v692
    %v696 = vmul.f32 1.0, %v695
    %v697 = vtanh.pop %v683
    %v698 = vtanh.pop %v684
    %v699 = vmul.f32 %v694, %v590
    %v700 = vmul.f32 %v696, %v591
    %703 = vrot.lane.b32.xlu0 %v697, 64
    %v704 = vpop.permute.xlu0 %703
    %705 = vrot.lane.b32.xlu0 %v698, 64
    %v706 = vpop.permute.xlu0 %705
    %v709 = vmul.f32 %v694, %v704
    %v710 = vmul.f32 %v696, %v706
    %713 = vrot.lane.b32.xlu0 %v709, 32
    %v714 = vpop.permute.xlu0 %713
    %715 = vrot.lane.b32.xlu0 %v710, 32
    %v716 = vpop.permute.xlu0 %715
    %v719 = vadd.f32 %v699, %v714
    %v720 = vadd.f32 %v700, %v716
    %v721 = vtanh.pop %v719
    %v722 = vtanh.pop %v720
    %725 = vrot.lane.b32.xlu0 %v721, 64
    %v726 = vpop.permute.xlu0 %725
    %727 = vrot.lane.b32.xlu0 %v722, 64
    %v728 = vpop.permute.xlu0 %727
    %v731 = vmul.f32 %v694, %v726
    %v732 = vmul.f32 %v696, %v728
    %s733 = scalar_lea.vmem %s2, %s594
    %v734 = vld [vmem:[%s733] sm:$0xff]
    %v735 = vld [vmem:[%s733 + $0x8] sm:$0xff]
    %737 = vset.pattern.permute.xlu0 0
    %738 = vperm.xlu0 %737, %v734
    %v739 = vpop.permute.xlu0 %738
    %742 = vset.pattern.permute.xlu0 0
    %743 = vperm.xlu0 %742, %v735
    %v744 = vpop.permute.xlu0 %743
    %v746 = vmul.f32 %v739, %v731
    %v747 = vmul.f32 %v744, %v732
    %v748 = vadd.f32 %v592, %v746
    %v749 = vadd.f32 %v593, %v747
  $region58: #{tpu_custom_call.1} parent=0 // loop_footer
    %s585 = sadd.s32 %s583, 1
  $region59: #{tpu_custom_call.1} parent=0 // loop_footer_branch
    %582 = sbr.rel target = $region55
  $region60: #{tpu_custom_call.1} parent=0 // loop_exit
    _
  %v750 = vpack.c.bf16 %v573, %v558
  %v751 = vld [vmem:[%s8] sm:$0xf]
  %v752 = vld [vmem:[%s8 + $0x4] sm:$0xf]
  %v753 = vld [vmem:[%s8 + $0x8] sm:$0xf]
  %v754 = vld [vmem:[%s8 + $0xc] sm:$0xf]
  %v755 = vld [vmem:[%s9] sm:$0x1]
  %v757 = vlaneseq
  %v758 = vshrl.u32 %v757, 7
  %v759 = vsub.s32 0, %v758
  %v760 = vrot.slane %v755, %v759
  %v766 = vunpack.c.l.b16 %v751
  %v767 = vunpack.c.l.b16 %v752
  %v768 = vunpack.c.l.b16 %v753
  %v769 = vunpack.c.l.b16 %v754
  %v770 = vpack.c.b16 %v767, %v766
  %v771 = vpack.c.b16 %v769, %v768
  %v775 = vsel %vm294, %v750, 0
  %777 = vmatprep.subr.bf16.mxu0 0
  %778 = vmatpush1.bf16.msra.mxu0 0
  %779 = vmatprep.subr.bf16.mxu0 0
  %780 = vmatpush1.bf16.msra.mxu0 0
  %781 = vmatprep.subr.bf16.mxu0 0
  %782 = vmatpush1.bf16.msra.mxu0 0
  %783 = vmatprep.subr.bf16.mxu0 0
  %784 = vmatpush1.bf16.msra.mxu0 0
  %785 = vmatprep.subr.bf16.mxu0 0
  %786 = vmatpush1.bf16.msra.mxu0 0
  %787 = vmatprep.subr.bf16.mxu0 0
  %788 = vmatpush1.bf16.msra.mxu0 0
  %789 = vmatprep.subr.bf16.mxu0 0
  %790 = vmatpush1.bf16.msra.mxu0 %v771
  %791 = vmatprep.subr.bf16.mxu0 0
  %792 = vmatpush1.bf16.msra.mxu0 %v770
  %793 = vmatprep.subr.bf16.mxu0 0
  %794 = vmatpush2.bf16.msra.mxu0 0
  %795 = vmatprep.subr.bf16.mxu0 0
  %796 = vmatpush2.bf16.msra.mxu0 0
  %797 = vmatprep.subr.bf16.mxu0 0
  %798 = vmatpush2.bf16.msra.mxu0 0
  %799 = vmatprep.subr.bf16.mxu0 0
  %800 = vmatpush2.bf16.msra.mxu0 0
  %801 = vmatprep.subr.bf16.mxu0 0
  %802 = vmatpush2.bf16.msra.mxu0 0
  %803 = vmatprep.subr.bf16.mxu0 0
  %804 = vmatpush2.bf16.msra.mxu0 0
  %805 = vmatprep.subr.bf16.mxu0 0
  %806 = vmatpush2.bf16.msra.mxu0 0
  %807 = vmatprep.subr.bf16.mxu0 0
  %808 = vmatpush2.bf16.msra.mxu0 0
  %809 = vmatprep.mubr.bf16.mxu0 0
  %810 = vmatmul.mubr.bf16.gmra.mxu0 %v775
  %v811 = vpop.f32.mrf.mxu0
  %v812 = vadd.f32 %v760, %v811
  %v813 = vpop.f32.mrf.mxu0
  %v814 = vpop.f32.mrf.mxu0
  %v815 = vadd.f32 %v760, %v814
  %v816 = vpop.f32.mrf.mxu0
  %817 = vdwg.mxu0
  %v818 = vxor.u32 %v812, 2147483648
  %v819 = vxor.u32 %v815, 2147483648
  %v820 = vmul.f32 %v818, 1.442695
  %v821 = vpow.pop %v820
  %v822 = vmul.f32 %v819, 1.442695
  %v823 = vpow.pop %v822
  %v824 = vadd.f32 %v821, 1.0
  %v825 = vadd.f32 %v823, 1.0
  %v826 = vrcp.pop %v824
  %v827 = vmul.f32 1.0, %v826
  %v828 = vrcp.pop %v825
  %v829 = vmul.f32 1.0, %v828
  %v830 = vtanh.pop %v812
  %v831 = vtanh.pop %v815
  %v832 = vmul.f32 %v827, 0.0
  %v833 = vmul.f32 %v829, 0.0
  %836 = vrot.lane.b32.xlu0 %v830, 64
  %v837 = vpop.permute.xlu0 %836
  %838 = vrot.lane.b32.xlu0 %v831, 64
  %v839 = vpop.permute.xlu0 %838
  %v842 = vmul.f32 %v827, %v837
  %v843 = vmul.f32 %v829, %v839
  %846 = vrot.lane.b32.xlu0 %v842, 32
  %v847 = vpop.permute.xlu0 %846
  %848 = vrot.lane.b32.xlu0 %v843, 32
  %v849 = vpop.permute.xlu0 %848
  %v852 = vadd.f32 %v832, %v847
  %v853 = vadd.f32 %v833, %v849
  %v854 = vtanh.pop %v852
  %v855 = vtanh.pop %v853
  %858 = vrot.lane.b32.xlu0 %v854, 64
  %v859 = vpop.permute.xlu0 %858
  %860 = vrot.lane.b32.xlu0 %v855, 64
  %v861 = vpop.permute.xlu0 %860
  %v864 = vmul.f32 %v827, %v859
  %v865 = vmul.f32 %v829, %v861
  %868 = vrot.lane.b32.xlu0 %v592, 32
  %v869 = vpop.permute.xlu0 %868
  %870 = vrot.lane.b32.xlu0 %v593, 32
  %v871 = vpop.permute.xlu0 %870
  %876 = vrot.lane.b32.xlu0 %v864, 64
  %v877 = vpop.permute.xlu0 %876
  %878 = vrot.lane.b32.xlu0 %v865, 64
  %v879 = vpop.permute.xlu0 %878
  %v882 = vsel %vm294, %v869, %v877
  %v883 = vsel %vm294, %v871, %v879
  %v884 = vld [vmem:[%s10] sm:$0xff]
  %v885 = vld [vmem:[%s10 + $0x8] sm:$0xff]
  %v886 = vld [vmem:[%s10 + $0x10] sm:$0xff]
  %v887 = vld [vmem:[%s10 + $0x18] sm:$0xff]
  %v888 = vld [vmem:[%s10 + $0x20] sm:$0xff]
  %v889 = vld [vmem:[%s10 + $0x28] sm:$0xff]
  %v890 = vld [vmem:[%s10 + $0x30] sm:$0xff]
  %v891 = vld [vmem:[%s10 + $0x38] sm:$0xff]
  %v892 = vld [vmem:[%s11] sm:$0x1]
  %v894 = vlaneseq
  %v895 = vshrl.u32 %v894, 7
  %v896 = vsub.s32 0, %v895
  %v897 = vrot.slane %v892, %v896
  %vm899 = vcmask 523264
  %v901 = vsel %vm899, %v882, 0
  %v904 = vsel %vm899, %v883, 0
  %906 = vmatprep.subr.mxu0 0.0
  %907 = vmatpush1.msra.mxu0 0.0
  %908 = vmatprep.subr.mxu0 0.0
  %909 = vmatpush1.msra.mxu0 0.0
  %910 = vmatprep.subr.mxu0 0.0
  %911 = vmatpush1.msra.mxu0 0.0
  %912 = vmatprep.subr.mxu0 0.0
  %913 = vmatpush1.msra.mxu0 0.0
  %914 = vmatprep.subr.mxu0 0.0
  %915 = vmatpush1.msra.mxu0 0.0
  %916 = vmatprep.subr.mxu0 0.0
  %917 = vmatpush1.msra.mxu0 0.0
  %918 = vmatprep.subr.mxu0 0.0
  %919 = vmatpush1.msra.mxu0 0.0
  %920 = vmatprep.subr.mxu0 0.0
  %921 = vmatpush1.msra.mxu0 0.0
  %922 = vmatprep.subr.mxu0 0.0
  %923 = vmatpush1.msra.mxu0 %v891
  %924 = vmatprep.subr.mxu0 0.0
  %925 = vmatpush1.msra.mxu0 %v890
  %926 = vmatprep.subr.mxu0 0.0
  %927 = vmatpush1.msra.mxu0 %v889
  %928 = vmatprep.subr.mxu0 0.0
  %929 = vmatpush1.msra.mxu0 %v888
  %930 = vmatprep.subr.mxu0 0.0
  %931 = vmatpush1.msra.mxu0 %v887
  %932 = vmatprep.subr.mxu0 0.0
  %933 = vmatpush1.msra.mxu0 %v886
  %934 = vmatprep.subr.mxu0 0.0
  %935 = vmatpush1.msra.mxu0 %v885
  %936 = vmatprep.subr.mxu0 0.0
  %937 = vmatpush1.msra.mxu0 %v884
  %938 = vmatprep.subr.mxu0 0.0
  %939 = vmatpush2.msra.mxu0 0.0
  %940 = vmatprep.subr.mxu0 0.0
  %941 = vmatpush2.msra.mxu0 0.0
  %942 = vmatprep.subr.mxu0 0.0
  %943 = vmatpush2.msra.mxu0 0.0
  %944 = vmatprep.subr.mxu0 0.0
  %945 = vmatpush2.msra.mxu0 0.0
  %946 = vmatprep.subr.mxu0 0.0
  %947 = vmatpush2.msra.mxu0 0.0
  %948 = vmatprep.subr.mxu0 0.0
  %949 = vmatpush2.msra.mxu0 0.0
  %950 = vmatprep.subr.mxu0 0.0
  %951 = vmatpush2.msra.mxu0 0.0
  %952 = vmatprep.subr.mxu0 0.0
  %953 = vmatpush2.msra.mxu0 0.0
  %954 = vmatprep.subr.mxu0 0.0
  %955 = vmatpush2.msra.mxu0 0.0
  %956 = vmatprep.subr.mxu0 0.0
  %957 = vmatpush2.msra.mxu0 0.0
  %958 = vmatprep.subr.mxu0 0.0
  %959 = vmatpush2.msra.mxu0 0.0
  %960 = vmatprep.subr.mxu0 0.0
  %961 = vmatpush2.msra.mxu0 0.0
  %962 = vmatprep.subr.mxu0 0.0
  %963 = vmatpush2.msra.mxu0 0.0
  %964 = vmatprep.subr.mxu0 0.0
  %965 = vmatpush2.msra.mxu0 0.0
  %966 = vmatprep.subr.mxu0 0.0
  %967 = vmatpush2.msra.mxu0 0.0
  %968 = vmatprep.subr.mxu0 0.0
  %969 = vmatpush2.msra.mxu0 0.0
  %970 = vmatprep.mubr.f32.mxu0 0.0
  %971 = vmatmul.mubr.f32.gmra.mxu0 %v901
  %v972 = vpop.f32.mrf.mxu0
  %v973 = vadd.f32 %v897, %v972
  %v974 = vpop.f32.mrf.mxu0
  %975 = vmatprep.mubr.f32.mxu0 0.0
  %976 = vmatmul.mubr.f32.gmra.mxu0 %v904
  %v977 = vpop.f32.mrf.mxu0
  %v978 = vadd.f32 %v897, %v977
  %v979 = vpop.f32.mrf.mxu0
  %980 = vdwg.mxu0
  %v981 = vmax.f32 %v973, 0.0
  %v982 = vmax.f32 %v978, 0.0
  %v983 = vld [vmem:[%s12] sm:$0xff]
  %v984 = vld [vmem:[%s12 + $0x8] sm:$0xff]
  %v985 = vld [vmem:[#allocation5] sm:$0x1]
  %v987 = vlaneseq
  %v988 = vshrl.u32 %v987, 7
  %v989 = vsub.s32 0, %v988
  %v990 = vrot.slane %v985, %v989
  %v993 = vsel %vm125, %v981, 0
  %v996 = vsel %vm125, %v982, 0
  %998 = vmatprep.subr.mxu0 0.0
  %999 = vmatpush1.msra.mxu0 0.0
  %1000 = vmatprep.subr.mxu0 0.0
  %1001 = vmatpush1.msra.mxu0 0.0
  %1002 = vmatprep.subr.mxu0 0.0
  %1003 = vmatpush1.msra.mxu0 0.0
  %1004 = vmatprep.subr.mxu0 0.0
  %1005 = vmatpush1.msra.mxu0 0.0
  %1006 = vmatprep.subr.mxu0 0.0
  %1007 = vmatpush1.msra.mxu0 0.0
  %1008 = vmatprep.subr.mxu0 0.0
  %1009 = vmatpush1.msra.mxu0 0.0
  %1010 = vmatprep.subr.mxu0 0.0
  %1011 = vmatpush1.msra.mxu0 0.0
  %1012 = vmatprep.subr.mxu0 0.0
  %1013 = vmatpush1.msra.mxu0 0.0
  %1014 = vmatprep.subr.mxu0 0.0
  %1015 = vmatpush1.msra.mxu0 0.0
  %1016 = vmatprep.subr.mxu0 0.0
  %1017 = vmatpush1.msra.mxu0 0.0
  %1018 = vmatprep.subr.mxu0 0.0
  %1019 = vmatpush1.msra.mxu0 0.0
  %1020 = vmatprep.subr.mxu0 0.0
  %1021 = vmatpush1.msra.mxu0 0.0
  %1022 = vmatprep.subr.mxu0 0.0
  %1023 = vmatpush1.msra.mxu0 0.0
  %1024 = vmatprep.subr.mxu0 0.0
  %1025 = vmatpush1.msra.mxu0 0.0
  %1026 = vmatprep.subr.mxu0 0.0
  %1027 = vmatpush1.msra.mxu0 %v984
  %1028 = vmatprep.subr.mxu0 0.0
  %1029 = vmatpush1.msra.mxu0 %v983
  %1030 = vmatprep.subr.mxu0 0.0
  %1031 = vmatpush2.msra.mxu0 0.0
  %1032 = vmatprep.subr.mxu0 0.0
  %1033 = vmatpush2.msra.mxu0 0.0
  %1034 = vmatprep.subr.mxu0 0.0
  %1035 = vmatpush2.msra.mxu0 0.0
  %1036 = vmatprep.subr.mxu0 0.0
  %1037 = vmatpush2.msra.mxu0 0.0
  %1038 = vmatprep.subr.mxu0 0.0
  %1039 = vmatpush2.msra.mxu0 0.0
  %1040 = vmatprep.subr.mxu0 0.0
  %1041 = vmatpush2.msra.mxu0 0.0
  %1042 = vmatprep.subr.mxu0 0.0
  %1043 = vmatpush2.msra.mxu0 0.0
  %1044 = vmatprep.subr.mxu0 0.0
  %1045 = vmatpush2.msra.mxu0 0.0
  %1046 = vmatprep.subr.mxu0 0.0
  %1047 = vmatpush2.msra.mxu0 0.0
  %1048 = vmatprep.subr.mxu0 0.0
  %1049 = vmatpush2.msra.mxu0 0.0
  %1050 = vmatprep.subr.mxu0 0.0
  %1051 = vmatpush2.msra.mxu0 0.0
  %1052 = vmatprep.subr.mxu0 0.0
  %1053 = vmatpush2.msra.mxu0 0.0
  %1054 = vmatprep.subr.mxu0 0.0
  %1055 = vmatpush2.msra.mxu0 0.0
  %1056 = vmatprep.subr.mxu0 0.0
  %1057 = vmatpush2.msra.mxu0 0.0
  %1058 = vmatprep.subr.mxu0 0.0
  %1059 = vmatpush2.msra.mxu0 0.0
  %1060 = vmatprep.subr.mxu0 0.0
  %1061 = vmatpush2.msra.mxu0 0.0
  %1062 = vmatprep.mubr.f32.mxu0 0.0
  %1063 = vmatmul.mubr.f32.gmra.mxu0 %v993
  %v1064 = vpop.f32.mrf.mxu0
  %v1065 = vadd.f32 %v990, %v1064
  %v1066 = vpop.f32.mrf.mxu0
  %1067 = vmatprep.mubr.f32.mxu0 0.0
  %1068 = vmatmul.mubr.f32.gmra.mxu0 %v996
  %v1069 = vpop.f32.mrf.mxu0
  %v1070 = vadd.f32 %v990, %v1069
  %v1071 = vpop.f32.mrf.mxu0
  %1072 = vdwg.mxu0
  %v1073 = vxor.u32 %v1065, 2147483648
  %v1074 = vxor.u32 %v1070, 2147483648
  %v1075 = vmul.f32 %v1073, 1.442695
  %v1076 = vpow.pop %v1075
  %v1077 = vmul.f32 %v1074, 1.442695
  %v1078 = vpow.pop %v1077
  %v1079 = vadd.f32 %v1076, 1.0
  %v1080 = vadd.f32 %v1078, 1.0
  %v1081 = vrcp.pop %v1079
  %v1082 = vmul.f32 1.0, %v1081
  %v1083 = vrcp.pop %v1080
  %v1084 = vmul.f32 1.0, %v1083
  %vm1085 = vcmask 7168
  %1086 = vst.msk [vmem:[%s14] sm:$0xff] %vm1085, %v1082
  %1087 = vst.msk [vmem:[%s14 + $0x8] sm:$0xff] %vm1085, %v1084
  // Predicated region
  $region61: #{tpu_custom_call.1} parent=0 // pred_check
    _
  $region62: #{tpu_custom_call.1} parent=0 // pred_check_branch
    %1089 = sbr.rel (0) target = $region64
  $region63: #{tpu_custom_call.1} parent=0 // pred_region
    _
  $region64: #{tpu_custom_call.1} parent=0 // pred_fallthru
    _
  // Predicated region
  $region65: #{tpu_custom_call.1} parent=0 // pred_check
    _
  $region66: #{tpu_custom_call.1} parent=0 // pred_check_branch
    %1091 = sbr.rel (0) target = $region68
  $region67: #{tpu_custom_call.1} parent=0 // pred_region
    _
  $region68: #{tpu_custom_call.1} parent=0 // pred_fallthru
    _

</llo_original>
